<compile_context>
chip_gen: v7x
topology: tpu7x:2x2x1
jax: 0.10.0
libtpu: 0.0.40
codegen_flags: <defaults>
</compile_context>

<pallas_src>
import functools

import jax
import jax.numpy as jnp
from jax import lax
from jax.experimental import pallas as pl
from jax.experimental.pallas import tpu as pltpu


# x @ W with pre-transposed (in_features, out_features) weights:
# contract lhs dim 1 with rhs dim 0.
_CONTRACT_XW = (((1,), (0,)), ((), ()))


def _round_up(a, m):
    return ((a + m - 1) // m) * m


def _resident(shape):
    # Whole array as a single block, same block index every grid step -> stays
    # resident in VMEM, not re-DMA'd per batch tile.
    return pl.BlockSpec(shape, lambda i: (0,) * len(shape))


def _batch_spec(tb, inner):
    return pl.BlockSpec((tb, inner), lambda i: (i, 0))


def _cost(B, n_states, n_middle, n_actions, n_nets):
    flops = 2 * B * (n_states * n_middle + n_middle * n_actions) * n_nets
    bytes_accessed = 4 * (
        B * n_states
        + n_nets * (n_middle * n_states + n_middle + n_actions * n_middle + n_actions)
        + n_nets * B * n_actions
    )
    return pl.CostEstimate(flops=flops, transcendentals=0, bytes_accessed=bytes_accessed)


def _batch_tiling(B, num_batch_tiles):
    # num_batch_tiles=1 -> tb=B, grid=1 (no pipeline overhead; VMEM never binds here).
    # num_batch_tiles=2 -> two tiles for the two v7x TensorCores ("parallel" axis).
    tb = min(B, _round_up(pl.cdiv(B, num_batch_tiles), 8))
    return tb, (pl.cdiv(B, tb),)


def _net_kernel(x_ref, w1_ref, b1_ref, w2_ref, b2_ref, out_ref):
    """fc1 -> ReLU -> out with weights already in (in, out) layout."""
    h = lax.dot_general(x_ref[...], w1_ref[...], _CONTRACT_XW,
                        preferred_element_type=jnp.float32)
    h = jnp.maximum(h + b1_ref[...], 0.0)          # bias + ReLU on the VPU, f32
    q = lax.dot_general(h, w2_ref[...], _CONTRACT_XW,
                        preferred_element_type=jnp.float32)
    out_ref[...] = (q + b2_ref[...]).astype(out_ref.dtype)


def _double_dqn_target_kernel(x_ref, w1_ref, b1_ref, w2_ref, b2_ref, r_ref, done_ref,
                              y_ref, *, n_actions, gamma):
    """Fused: eval+target forward on s' (merged weights), then the Double-DQN
    target y = r + gamma * Q_target(s', argmax_a Q_eval(s', a)) * (1 - done)."""
    h = lax.dot_general(x_ref[...], w1_ref[...], _CONTRACT_XW,
                        preferred_element_type=jnp.float32)
    h = jnp.maximum(h + b1_ref[...], 0.0)
    q = lax.dot_general(h, w2_ref[...], _CONTRACT_XW,
                        preferred_element_type=jnp.float32) + b2_ref[...]
    qe = q[:, :n_actions]          # eval-net  Q(s', .)
    qt = q[:, n_actions:]          # target-net Q(s', .)
    # argmax (first occurrence) over the lane axis without a gather:
    col = lax.broadcasted_iota(jnp.int32, qe.shape, 1)
    m = jnp.max(qe, axis=-1, keepdims=True)
    a_star = jnp.min(jnp.where(qe == m, col, n_actions), axis=-1, keepdims=True)
    q_next = jnp.sum(jnp.where(col == a_star, qt, 0.0), axis=-1, keepdims=True)
    y_ref[...] = (r_ref[...] + gamma * q_next * (1.0 - done_ref[...])).astype(y_ref.dtype)


@functools.partial(jax.jit, static_argnames=("num_batch_tiles", "x_dtype"))
def net_forward(x, w1, b1, w2, b2, *, num_batch_tiles=1, x_dtype=jnp.float32):
    """x: (B, n_states); w1: (n_middle, n_states); b1: (n_middle,);
    w2: (n_actions, n_middle); b2: (n_actions,). Returns (B, n_actions) f32."""
    B, n_states = x.shape
    n_middle = w1.shape[0]
    n_actions = w2.shape[0]

    x = x.astype(x_dtype)
    w1 = w1.T.astype(x_dtype)                  # (n_states, n_middle), matches x dtype for MXU
    w2 = w2.T.astype(jnp.float32)              # h is f32 (preferred_element_type) -> f32 layer 2
    b1 = b1.reshape(1, n_middle).astype(jnp.float32)
    b2 = b2.reshape(1, n_actions).astype(jnp.float32)

    tb, grid = _batch_tiling(B, num_batch_tiles)

    return pl.pallas_call(
        _net_kernel,
        out_shape=jax.ShapeDtypeStruct((B, n_actions), jnp.float32),
        grid=grid,
        in_specs=[
            _batch_spec(tb, n_states),
            _resident((n_states, n_middle)),
            _resident((1, n_middle)),
            _resident((n_middle, n_actions)),
            _resident((1, n_actions)),
        ],
        out_specs=_batch_spec(tb, n_actions),
        compiler_params=pltpu.CompilerParams(dimension_semantics=("parallel",)),
        cost_estimate=_cost(B, n_states, n_middle, n_actions, n_nets=1),
    )(x, w1, b1, w2, b2)


def _merge_double_params(eval_params, target_params, x_dtype):
    """One weight per layer for BOTH nets: W1 concatenated along out_features,
    W2 block-diagonal -> a single MXU matmul per layer in the kernel."""
    w1e, b1e, w2e, b2e = eval_params
    w1t, b1t, w2t, b2t = target_params
    n_middle = w1e.shape[0]
    n_actions = w2e.shape[0]
    w1 = jnp.concatenate([w1e.T, w1t.T], axis=1).astype(x_dtype)       # (n_states, 2*n_middle)
    b1 = jnp.concatenate([b1e, b1t]).reshape(1, 2 * n_middle).astype(jnp.float32)
    z = jnp.zeros((n_middle, n_actions), jnp.float32)
    w2 = jnp.block([[w2e.T.astype(jnp.float32), z],
                    [z, w2t.T.astype(jnp.float32)]])                   # (2*n_middle, 2*n_actions)
    b2 = jnp.concatenate([b2e, b2t]).reshape(1, 2 * n_actions).astype(jnp.float32)
    return w1, b1, w2, b2, n_middle, n_actions


@functools.partial(jax.jit, static_argnames=("num_batch_tiles", "x_dtype"))
def double_net_forward(x, eval_params, target_params, *, num_batch_tiles=1,
                       x_dtype=jnp.float32):
    """Fused eval-net + target-net forward in ONE pallas_call with ONE matmul per layer.
    Each params tuple is (w1, b1, w2, b2) in PyTorch layout.
    Returns (q_eval, q_target), each (B, n_actions)."""
    B, n_states = x.shape
    x = x.astype(x_dtype)
    w1, b1, w2, b2, n_middle, n_actions = _merge_double_params(
        eval_params, target_params, x_dtype)

    tb, grid = _batch_tiling(B, num_batch_tiles)

    q = pl.pallas_call(
        _net_kernel,
        out_shape=jax.ShapeDtypeStruct((B, 2 * n_actions), jnp.float32),
        grid=grid,
        in_specs=[
            _batch_spec(tb, n_states),
            _resident((n_states, 2 * n_middle)),
            _resident((1, 2 * n_middle)),
            _resident((2 * n_middle, 2 * n_actions)),
            _resident((1, 2 * n_actions)),
        ],
        out_specs=_batch_spec(tb, 2 * n_actions),
        compiler_params=pltpu.CompilerParams(dimension_semantics=("parallel",)),
        cost_estimate=_cost(B, n_states, n_middle, n_actions, n_nets=2),
    )(x, w1, b1, w2, b2)
    return q[:, :n_actions], q[:, n_actions:]


@functools.partial(jax.jit, static_argnames=("gamma", "num_batch_tiles"))
def double_dqn_target(x_next, r, done, eval_params, target_params, *, gamma=0.9,
                      num_batch_tiles=1):
    """Fully fused Double-DQN TD target:
       y = r + gamma * Q_target(s', argmax_a Q_eval(s', a)) * (1 - done)
    in a single pallas_call. Returns (B, 1) f32."""
    B, n_states = x_next.shape
    x_next = x_next.astype(jnp.float32)
    w1, b1, w2, b2, n_middle, n_actions = _merge_double_params(
        eval_params, target_params, jnp.float32)
    r = r.reshape(B, 1).astype(jnp.float32)
    done = done.reshape(B, 1).astype(jnp.float32)

    tb, grid = _batch_tiling(B, num_batch_tiles)
    kernel = functools.partial(_double_dqn_target_kernel,
                               n_actions=n_actions, gamma=float(gamma))

    return pl.pallas_call(
        kernel,
        out_shape=jax.ShapeDtypeStruct((B, 1), jnp.float32),
        grid=grid,
        in_specs=[
            _batch_spec(tb, n_states),
            _resident((n_states, 2 * n_middle)),
            _resident((1, 2 * n_middle)),
            _resident((2 * n_middle, 2 * n_actions)),
            _resident((1, 2 * n_actions)),
            _batch_spec(tb, 1),
            _batch_spec(tb, 1),
        ],
        out_specs=_batch_spec(tb, 1),
        compiler_params=pltpu.CompilerParams(dimension_semantics=("parallel",)),
        cost_estimate=_cost(B, n_states, n_middle, n_actions, n_nets=2),
    )(x_next, w1, b1, w2, b2, r, done)


def init_params(key, n_states, n_middle, n_actions):
    """Mirror the PyTorch module: weights ~ Normal(0, 0.1); biases use nn.Linear's
    default U(-1/sqrt(fan_in), 1/sqrt(fan_in))."""
    k1, k2, k3, k4 = jax.random.split(key, 4)
    w1 = 0.1 * jax.random.normal(k1, (n_middle, n_states), dtype=jnp.float32)
    w2 = 0.1 * jax.random.normal(k2, (n_actions, n_middle), dtype=jnp.float32)
    bound1 = 1.0 / jnp.sqrt(jnp.float32(n_states))
    bound2 = 1.0 / jnp.sqrt(jnp.float32(n_middle))
    b1 = jax.random.uniform(k3, (n_middle,), jnp.float32, -bound1, bound1)
    b2 = jax.random.uniform(k4, (n_actions,), jnp.float32, -bound2, bound2)
    return w1, b1, w2, b2


if __name__ == "__main__":
    # Small shapes consistent with a DQN state->action net.
    batch, n_states, n_middle, n_actions = 8, 4, 32, 2

    key = jax.random.PRNGKey(0)
    k_x, k_eval, k_target, k_r, k_done = jax.random.split(key, 5)
    x = jax.random.normal(k_x, (batch, n_states), dtype=jnp.float32)
    eval_params = init_params(k_eval, n_states, n_middle, n_actions)
    target_params = init_params(k_target, n_states, n_middle, n_actions)
    r = jax.random.normal(k_r, (batch,), dtype=jnp.float32)
    done = (jax.random.uniform(k_done, (batch,)) < 0.3).astype(jnp.float32)
    gamma = 0.9

    def ref(xv, params):
        w1, b1, w2, b2 = params
        return jnp.maximum(xv @ w1.T + b1, 0.0) @ w2.T + b2

    # Single-net forward (same semantics as the PyTorch Net.forward), grid=1.
    q = jax.block_until_ready(net_forward(x, *eval_params))
    assert q.shape == (batch, n_actions)
    assert jnp.allclose(q, ref(x, eval_params), atol=1e-5, rtol=1e-5)

    # bf16-input path (halves the batch-scaled HBM traffic); looser tolerance.
    q_bf16 = jax.block_until_ready(net_forward(x, *eval_params, x_dtype=jnp.bfloat16))
    assert jnp.allclose(q_bf16, ref(x, eval_params), atol=2e-2, rtol=2e-2)

    # Fused Double-DQN forward: eval + target nets, ONE matmul per layer.
    q_eval, q_target = double_net_forward(x, eval_params, target_params)
    jax.block_until_ready((q_eval, q_target))
    assert jnp.allclose(q_eval, ref(x, eval_params), atol=1e-5, rtol=1e-5)
    assert jnp.allclose(q_target, ref(x, target_params), atol=1e-5, rtol=1e-5)

    # Fully fused Double-DQN TD target (forward + argmax + gather + Bellman).
    y = jax.block_until_ready(
        double_dqn_target(x, r, done, eval_params, target_params, gamma=gamma))
    qe_ref = ref(x, eval_params)
    qt_ref = ref(x, target_params)
    a_star = jnp.argmax(qe_ref, axis=-1)
    q_next = jnp.take_along_axis(qt_ref, a_star[:, None], axis=-1)[:, 0]
    y_ref = r + gamma * q_next * (1.0 - done)
    assert jnp.allclose(y[:, 0], y_ref, atol=1e-5, rtol=1e-5)

    print("KERNEL_OK")
</pallas_src>

<mosaic_0001>
module attributes {stable_mosaic.version = 11 : i64} {
  func.func @_net_kernel(%arg0: i32, %arg1: memref<8x4xf32, #tpu.memory_space<vmem>>, %arg2: memref<4x32xf32, #tpu.memory_space<vmem>>, %arg3: memref<1x32xf32, #tpu.memory_space<vmem>>, %arg4: memref<32x2xf32, #tpu.memory_space<vmem>>, %arg5: memref<1x2xf32, #tpu.memory_space<vmem>>, %arg6: memref<8x2xf32, #tpu.memory_space<vmem>>) attributes {dimension_semantics = [#tpu.dimension_semantics<parallel>], iteration_bounds = array<i64: 1>, scalar_prefetch = 0 : i64, scratch_operands = 0 : i64, tpu.core_type = #tpu.core_type<tc>, window_params = [{transform_indices = @transform_0, window_bounds = array<i64: 8, 4>}, {pipeline_mode = #tpu.pipeline_mode<synchronous>, transform_indices = @transform_1, window_bounds = array<i64: 4, 32>}, {pipeline_mode = #tpu.pipeline_mode<synchronous>, transform_indices = @transform_2, window_bounds = array<i64: 1, 32>}, {pipeline_mode = #tpu.pipeline_mode<synchronous>, transform_indices = @transform_3, window_bounds = array<i64: 32, 2>}, {pipeline_mode = #tpu.pipeline_mode<synchronous>, transform_indices = @transform_4, window_bounds = array<i64: 1, 2>}, {transform_indices = @transform_5, window_bounds = array<i64: 8, 2>}]} {
    %c0 = arith.constant 0 : index
    %c0_0 = arith.constant 0 : index
    %0 = vector.load %arg1[%c0, %c0_0] : memref<8x4xf32, #tpu.memory_space<vmem>>, vector<8x4xf32>
    %c0_1 = arith.constant 0 : index
    %c0_2 = arith.constant 0 : index
    %1 = vector.load %arg2[%c0_1, %c0_2] : memref<4x32xf32, #tpu.memory_space<vmem>>, vector<4x32xf32>
    %cst = arith.constant dense<0.000000e+00> : vector<8x32xf32>
    %2 = tpu.matmul %0, %1, %cst {dimension_numbers = #tpu.dot_dimension_numbers<[1], [0], [0], [1], [0, 0, 1, 1], [], []>} : vector<8x4xf32>, vector<4x32xf32>, vector<8x32xf32> -> vector<8x32xf32>
    %c0_3 = arith.constant 0 : index
    %c0_4 = arith.constant 0 : index
    %3 = vector.load %arg3[%c0_3, %c0_4] : memref<1x32xf32, #tpu.memory_space<vmem>>, vector<1x32xf32>
    %4 = vector.broadcast %3 : vector<1x32xf32> to vector<8x32xf32>
    %5 = arith.addf %2, %4 : vector<8x32xf32>
    %cst_5 = arith.constant 0.000000e+00 : f32
    %6 = vector.broadcast %cst_5 : f32 to vector<8x32xf32>
    %7 = arith.maximumf %5, %6 : vector<8x32xf32>
    %c0_6 = arith.constant 0 : index
    %c0_7 = arith.constant 0 : index
    %8 = vector.load %arg4[%c0_6, %c0_7] : memref<32x2xf32, #tpu.memory_space<vmem>>, vector<32x2xf32>
    %cst_8 = arith.constant dense<0.000000e+00> : vector<8x2xf32>
    %9 = tpu.matmul %7, %8, %cst_8 {dimension_numbers = #tpu.dot_dimension_numbers<[1], [0], [0], [1], [0, 0, 1, 1], [], []>} : vector<8x32xf32>, vector<32x2xf32>, vector<8x2xf32> -> vector<8x2xf32>
    %c0_9 = arith.constant 0 : index
    %c0_10 = arith.constant 0 : index
    %10 = vector.load %arg5[%c0_9, %c0_10] : memref<1x2xf32, #tpu.memory_space<vmem>>, vector<1x2xf32>
    %11 = vector.broadcast %10 : vector<1x2xf32> to vector<8x2xf32>
    %12 = arith.addf %9, %11 : vector<8x2xf32>
    %c0_11 = arith.constant 0 : index
    %c0_12 = arith.constant 0 : index
    %13 = vector.load %arg6[%c0_11, %c0_12] : memref<8x2xf32, #tpu.memory_space<vmem>>, vector<8x2xf32>
    tpu.vector_store %arg6[%c0_11, %c0_12], %12 {strides = array<i32>} : memref<8x2xf32, #tpu.memory_space<vmem>>, vector<8x2xf32>,
    return
  }
  func.func @transform_0(%arg0: i32) -> (i32, i32) {
    %c0_i32 = arith.constant 0 : i32
    %c0_i32_0 = arith.constant 0 : i32
    return %arg0, %c0_i32 : i32, i32
  }
  func.func @transform_1(%arg0: i32) -> (i32, i32) {
    %c0_i32 = arith.constant 0 : i32
    %c0_i32_0 = arith.constant 0 : i32
    %c0_i32_1 = arith.constant 0 : i32
    return %c0_i32, %c0_i32_0 : i32, i32
  }
  func.func @transform_2(%arg0: i32) -> (i32, i32) {
    %c0_i32 = arith.constant 0 : i32
    %c0_i32_0 = arith.constant 0 : i32
    %c0_i32_1 = arith.constant 0 : i32
    return %c0_i32, %c0_i32_0 : i32, i32
  }
  func.func @transform_3(%arg0: i32) -> (i32, i32) {
    %c0_i32 = arith.constant 0 : i32
    %c0_i32_0 = arith.constant 0 : i32
    %c0_i32_1 = arith.constant 0 : i32
    return %c0_i32, %c0_i32_0 : i32, i32
  }
  func.func @transform_4(%arg0: i32) -> (i32, i32) {
    %c0_i32 = arith.constant 0 : i32
    %c0_i32_0 = arith.constant 0 : i32
    %c0_i32_1 = arith.constant 0 : i32
    return %c0_i32, %c0_i32_0 : i32, i32
  }
  func.func @transform_5(%arg0: i32) -> (i32, i32) {
    %c0_i32 = arith.constant 0 : i32
    %c0_i32_0 = arith.constant 0 : i32
    return %arg0, %c0_i32 : i32, i32
  }
}

</mosaic_0001>

<llo_original>
// kernel: net_forward.1
$region0: #{net_forward.1}
  #allocation0 [shape = 'u32[]', space=smem, size = 0x4, offset = 0x4, fixed_abs, tag = 'smem constant byte address 0x4 - core index']
  #allocation1 [shape = 'u32[144,128]{1,0:T(1,128)}', space=vmem, size = 0x12000, scoped, tag = 'internal scratch']
  %s0 = inlined_call_operand.vmem [shape: f32[8,4], index: 0, kind: input, shape index: {}]
  %s1 = inlined_call_operand.vmem [shape: f32[4,32], index: 1, kind: input, shape index: {}]
  %s2 = inlined_call_operand.vmem [shape: f32[1,32], index: 2, kind: input, shape index: {}]
  %s3 = inlined_call_operand.vmem [shape: f32[32,2], index: 3, kind: input, shape index: {}]
  %s4 = inlined_call_operand.vmem [shape: f32[1,2], index: 4, kind: input, shape index: {}]
  %s5 = inlined_call_operand.vmem [shape: f32[8,2], index: 5, kind: output, shape index: {}]
  %s6 = sld [smem:[#allocation0]]
  $region30: #{net_forward.1} parent=0
    _
  %s8 = ssub.s32 1, %s6
  %s9 = scalar_select 0, %s8, %s6
  // Predicated region
  $region2: #{net_forward.1} parent=0 // pred_check
    _
  $region3: #{net_forward.1} parent=0 // pred_check_branch
    %11 = sbr.rel (0) target = $region5
  $region4: #{net_forward.1} parent=0 // pred_region
    _
  $region5: #{net_forward.1} parent=0 // pred_fallthru
    _
  // Predicated region
  $region6: #{net_forward.1} parent=0 // pred_check
    _
  $region7: #{net_forward.1} parent=0 // pred_check_branch
    %13 = sbr.rel (0) target = $region9
  $region8: #{net_forward.1} parent=0 // pred_region
    _
  $region9: #{net_forward.1} parent=0 // pred_fallthru
    _
  // Predicated region
  $region10: #{net_forward.1} parent=0 // pred_check
    _
  $region11: #{net_forward.1} parent=0 // pred_check_branch
    %15 = sbr.rel (0) target = $region13
  $region12: #{net_forward.1} parent=0 // pred_region
    _
  $region13: #{net_forward.1} parent=0 // pred_fallthru
    _
  // Predicated region
  $region14: #{net_forward.1} parent=0 // pred_check
    _
  $region15: #{net_forward.1} parent=0 // pred_check_branch
    %17 = sbr.rel (0) target = $region17
  $region16: #{net_forward.1} parent=0 // pred_region
    _
  $region17: #{net_forward.1} parent=0 // pred_fallthru
    _
  // Predicated region
  $region18: #{net_forward.1} parent=0 // pred_check
    _
  $region19: #{net_forward.1} parent=0 // pred_check_branch
    %19 = sbr.rel (0) target = $region21
  $region20: #{net_forward.1} parent=0 // pred_region
    _
  $region21: #{net_forward.1} parent=0 // pred_fallthru
    _
  %v20 = vld [vmem:[%s0] sm:$0xff]
  %v21 = vld [vmem:[%s1] sm:$0xf]
  %v22 = vld [vmem:[%s2] sm:$0x1]
  %v24 = vlaneseq
  %v25 = vshrl.u32 %v24, 7
  %v26 = vsub.s32 0, %v25
  %v27 = vrot.slane %v22, %v26
  %vm29 = vcmask 31744
  %v31 = vsel %vm29, %v20, 0
  %vm33 = vcmask 1043456
  %v35 = vsel %vm33, %v21, 0
  %37 = vmatprep.subr.mxu0 0.0
  %38 = vmatpush1.msra.mxu0 %v35
  %39 = vmatprep.subr.mxu0 0.0
  %40 = vmatpush1.msra.mxu0 0.0
  %41 = vmatprep.subr.mxu0 0.0
  %42 = vmatpush1.msra.mxu0 0.0
  %43 = vmatprep.subr.mxu0 0.0
  %44 = vmatpush1.msra.mxu0 0.0
  %45 = vmatprep.subr.mxu0 0.0
  %46 = vmatpush1.msra.mxu0 0.0
  %47 = vmatprep.subr.mxu0 0.0
  %48 = vmatpush1.msra.mxu0 0.0
  %49 = vmatprep.subr.mxu0 0.0
  %50 = vmatpush1.msra.mxu0 0.0
  %51 = vmatprep.subr.mxu0 0.0
  %52 = vmatpush1.msra.mxu0 0.0
  %53 = vmatprep.subr.mxu0 0.0
  %54 = vmatpush1.msra.mxu0 0.0
  %55 = vmatprep.subr.mxu0 0.0
  %56 = vmatpush1.msra.mxu0 0.0
  %57 = vmatprep.subr.mxu0 0.0
  %58 = vmatpush1.msra.mxu0 0.0
  %59 = vmatprep.subr.mxu0 0.0
  %60 = vmatpush1.msra.mxu0 0.0
  %61 = vmatprep.subr.mxu0 0.0
  %62 = vmatpush1.msra.mxu0 0.0
  %63 = vmatprep.subr.mxu0 0.0
  %64 = vmatpush1.msra.mxu0 0.0
  %65 = vmatprep.subr.mxu0 0.0
  %66 = vmatpush1.msra.mxu0 0.0
  %67 = vmatprep.subr.mxu0 0.0
  %68 = vmatpush1.msra.mxu0 0.0
  %69 = vmatprep.subr.mxu0 0.0
  %70 = vmatpush1.msra.mxu0 0.0
  %71 = vmatprep.subr.mxu0 0.0
  %72 = vmatpush1.msra.mxu0 0.0
  %73 = vmatprep.subr.mxu0 0.0
  %74 = vmatpush1.msra.mxu0 0.0
  %75 = vmatprep.subr.mxu0 0.0
  %76 = vmatpush1.msra.mxu0 0.0
  %77 = vmatprep.subr.mxu0 0.0
  %78 = vmatpush1.msra.mxu0 0.0
  %79 = vmatprep.subr.mxu0 0.0
  %80 = vmatpush1.msra.mxu0 0.0
  %81 = vmatprep.subr.mxu0 0.0
  %82 = vmatpush1.msra.mxu0 0.0
  %83 = vmatprep.subr.mxu0 0.0
  %84 = vmatpush1.msra.mxu0 0.0
  %85 = vmatprep.subr.mxu0 0.0
  %86 = vmatpush1.msra.mxu0 0.0
  %87 = vmatprep.subr.mxu0 0.0
  %88 = vmatpush1.msra.mxu0 0.0
  %89 = vmatprep.subr.mxu0 0.0
  %90 = vmatpush1.msra.mxu0 0.0
  %91 = vmatprep.subr.mxu0 0.0
  %92 = vmatpush1.msra.mxu0 0.0
  %93 = vmatprep.subr.mxu0 0.0
  %94 = vmatpush1.msra.mxu0 0.0
  %95 = vmatprep.subr.mxu0 0.0
  %96 = vmatpush1.msra.mxu0 0.0
  %97 = vmatprep.subr.mxu0 0.0
  %98 = vmatpush1.msra.mxu0 0.0
  %99 = vmatprep.subr.mxu0 0.0
  %100 = vmatpush1.msra.mxu0 0.0
  %101 = vmatprep.mubr.f32.mxu0 0.0
  %102 = vmatmul.mubr.f32.gmra.mrb[0].mxu0 %v31
  %v103 = vpop.f32.mrb[0].mxu0
  %v104 = vadd.f32 %v27, %v103
  %v105 = vpop.f32.mrb[0].mxu0
  %106 = vdwg.mxu0
  %v107 = vmax.f32 %v104, 0.0
  %v108 = vld [vmem:[%s3] sm:$0xff]
  %v109 = vld [vmem:[%s3 + $0x8] sm:$0xff]
  %v110 = vld [vmem:[%s3 + $0x10] sm:$0xff]
  %v111 = vld [vmem:[%s3 + $0x18] sm:$0xff]
  %v112 = vld [vmem:[%s4] sm:$0x1]
  %v114 = vlaneseq
  %v115 = vshrl.u32 %v114, 7
  %v116 = vsub.s32 0, %v115
  %v117 = vrot.slane %v112, %v116
  %vm119 = vcmask 261120
  %v121 = vsel %vm119, %v107, 0
  %123 = vmatprep.subr.mxu0 0.0
  %124 = vmatpush1.msra.mxu0 %v108
  %125 = vmatprep.subr.mxu0 0.0
  %126 = vmatpush1.msra.mxu0 %v109
  %127 = vmatprep.subr.mxu0 0.0
  %128 = vmatpush1.msra.mxu0 %v110
  %129 = vmatprep.subr.mxu0 0.0
  %130 = vmatpush1.msra.mxu0 %v111
  %131 = vmatprep.subr.mxu0 0.0
  %132 = vmatpush1.msra.mxu0 0.0
  %133 = vmatprep.subr.mxu0 0.0
  %134 = vmatpush1.msra.mxu0 0.0
  %135 = vmatprep.subr.mxu0 0.0
  %136 = vmatpush1.msra.mxu0 0.0
  %137 = vmatprep.subr.mxu0 0.0
  %138 = vmatpush1.msra.mxu0 0.0
  %139 = vmatprep.subr.mxu0 0.0
  %140 = vmatpush1.msra.mxu0 0.0
  %141 = vmatprep.subr.mxu0 0.0
  %142 = vmatpush1.msra.mxu0 0.0
  %143 = vmatprep.subr.mxu0 0.0
  %144 = vmatpush1.msra.mxu0 0.0
  %145 = vmatprep.subr.mxu0 0.0
  %146 = vmatpush1.msra.mxu0 0.0
  %147 = vmatprep.subr.mxu0 0.0
  %148 = vmatpush1.msra.mxu0 0.0
  %149 = vmatprep.subr.mxu0 0.0
  %150 = vmatpush1.msra.mxu0 0.0
  %151 = vmatprep.subr.mxu0 0.0
  %152 = vmatpush1.msra.mxu0 0.0
  %153 = vmatprep.subr.mxu0 0.0
  %154 = vmatpush1.msra.mxu0 0.0
  %155 = vmatprep.subr.mxu0 0.0
  %156 = vmatpush1.msra.mxu0 0.0
  %157 = vmatprep.subr.mxu0 0.0
  %158 = vmatpush1.msra.mxu0 0.0
  %159 = vmatprep.subr.mxu0 0.0
  %160 = vmatpush1.msra.mxu0 0.0
  %161 = vmatprep.subr.mxu0 0.0
  %162 = vmatpush1.msra.mxu0 0.0
  %163 = vmatprep.subr.mxu0 0.0
  %164 = vmatpush1.msra.mxu0 0.0
  %165 = vmatprep.subr.mxu0 0.0
  %166 = vmatpush1.msra.mxu0 0.0
  %167 = vmatprep.subr.mxu0 0.0
  %168 = vmatpush1.msra.mxu0 0.0
  %169 = vmatprep.subr.mxu0 0.0
  %170 = vmatpush1.msra.mxu0 0.0
  %171 = vmatprep.subr.mxu0 0.0
  %172 = vmatpush1.msra.mxu0 0.0
  %173 = vmatprep.subr.mxu0 0.0
  %174 = vmatpush1.msra.mxu0 0.0
  %175 = vmatprep.subr.mxu0 0.0
  %176 = vmatpush1.msra.mxu0 0.0
  %177 = vmatprep.subr.mxu0 0.0
  %178 = vmatpush1.msra.mxu0 0.0
  %179 = vmatprep.subr.mxu0 0.0
  %180 = vmatpush1.msra.mxu0 0.0
  %181 = vmatprep.subr.mxu0 0.0
  %182 = vmatpush1.msra.mxu0 0.0
  %183 = vmatprep.subr.mxu0 0.0
  %184 = vmatpush1.msra.mxu0 0.0
  %185 = vmatprep.subr.mxu0 0.0
  %186 = vmatpush1.msra.mxu0 0.0
  %187 = vmatprep.mubr.f32.mxu0 0.0
  %188 = vmatmul.mubr.f32.gmra.mrb[0].mxu0 %v121
  %v189 = vpop.f32.mrb[0].mxu0
  %v190 = vadd.f32 %v117, %v189
  %v191 = vpop.f32.mrb[0].mxu0
  %192 = vdwg.mxu0
  %vm193 = vcmask 15360
  %194 = vst.msk [vmem:[%s5] sm:$0xff] %vm193, %v190
  // Predicated region
  $region22: #{net_forward.1} parent=0 // pred_check
    _
  $region23: #{net_forward.1} parent=0 // pred_check_branch
    %196 = sbr.rel (0) target = $region25
  $region24: #{net_forward.1} parent=0 // pred_region
    _
  $region25: #{net_forward.1} parent=0 // pred_fallthru
    _
  // Predicated region
  $region26: #{net_forward.1} parent=0 // pred_check
    _
  $region27: #{net_forward.1} parent=0 // pred_check_branch
    %198 = sbr.rel (0) target = $region29
  $region28: #{net_forward.1} parent=0 // pred_region
    _
  $region29: #{net_forward.1} parent=0 // pred_fallthru
    _

</llo_original>
